<compile_context>
chip_gen: v7x
topology: tpu7x:2x2x1
jax: 0.10.0
libtpu: 0.0.40
codegen_flags: <defaults>
</compile_context>

<pallas_src>
import functools
import math

import jax
import jax.numpy as jnp
from jax.experimental import pallas as pl
from jax.experimental.pallas import tpu as pltpu

LANE = 128
SUBLANE = 8
# Conservative budget: below v5e's 16 MiB default scoped VMEM (smallest of all gens).
_VMEM_BUDGET_BYTES = 14 * 1024 * 1024
# Single-buffer the resident weight/bias only when the saving is meaningful.
_SINGLE_BUFFER_THRESHOLD_BYTES = 1 << 20


def _round_up(v, m):
    return ((v + m - 1) // m) * m


def _cdiv(a, b):
    return -(-a // b)


# ----------------------------- Pallas kernel --------------------------------

def _gating_kernel(x_ref, w_ref, b_ref, o_ref):
    """One row tile: o = x @ w + b.  bf16 MXU inputs, f32 accumulation."""
    x = x_ref[...].astype(jnp.bfloat16)          # no-op if x already bf16
    acc = jnp.dot(x, w_ref[...], preferred_element_type=jnp.float32)
    o_ref[...] = (acc + b_ref[...]).astype(o_ref.dtype)   # (1, Np) bias broadcasts


# ------------------------------ tiling logic ---------------------------------

def _choose_tile_m(m8, k, n_pad, x_bytes, out_bytes, tile_m):
    """Largest 8-aligned row tile that fits the scoped-VMEM budget and leaves
    at least 2 tiles (both v7x TensorCores busy)."""
    # Worst case: weight + bias double-buffered, x tile + out tile double-buffered.
    fixed = 2 * (k * n_pad * 2 + n_pad * 4)
    per_row = 2 * (k * x_bytes + n_pad * out_bytes)
    cap_rows = max((_VMEM_BUDGET_BYTES - fixed) // per_row, SUBLANE)
    tm = min(tile_m, cap_rows, m8)
    if m8 > SUBLANE:                              # guarantee >= 2 row tiles
        tm = min(tm, _round_up(_cdiv(m8, 2), SUBLANE))
    tm = max(SUBLANE, (tm // SUBLANE) * SUBLANE)  # 8-aligned sublane dim
    return tm


def _resident_spec(shape, nbytes):
    """Resident (constant index_map) operand; single-buffer it once it is big."""
    kwargs = {}
    if nbytes >= _SINGLE_BUFFER_THRESHOLD_BYTES:
        kwargs["pipeline_mode"] = pl.Buffered(1)
    return pl.BlockSpec(shape, lambda i: (0, 0), **kwargs)


# ------------------------------ forward ---------------------------------------

@functools.partial(jax.jit,
                   static_argnames=("n", "tile_m", "out_dtype", "return_padded"))
def _gating_forward(x, w_packed, b_packed, *, n, tile_m, out_dtype, return_padded):
    *lead, k = x.shape
    m = 1
    for d in lead:
        m *= d
    n_pad = w_packed.shape[1]

    x2 = x.reshape(m, k)                       # NO dtype cast in the wrapper
    m8 = _round_up(max(m, SUBLANE), SUBLANE)   # pad rows only to sublane multiple
    if m8 != m:
        x2 = jnp.pad(x2, ((0, m8 - m), (0, 0)))

    x_bytes = x2.dtype.itemsize
    out_bytes = jnp.dtype(out_dtype).itemsize
    tm = _choose_tile_m(m8, k, n_pad, x_bytes, out_bytes, tile_m)
    grid_m = _cdiv(m8, tm)                     # Pallas clips the partial last tile

    cost = pl.CostEstimate(
        flops=2 * m8 * k * n_pad,
        transcendentals=0,
        bytes_accessed=m8 * k * x_bytes + k * n_pad * 2 + n_pad * 4
        + m8 * n_pad * out_bytes,
    )

    out = pl.pallas_call(
        _gating_kernel,
        out_shape=jax.ShapeDtypeStruct((m8, n_pad), out_dtype),
        grid_spec=pltpu.PrefetchScalarGridSpec(
            num_scalar_prefetch=0,
            grid=(grid_m,),
            in_specs=[
                pl.BlockSpec((tm, k), lambda i: (i, 0)),          # x row tile
                _resident_spec((k, n_pad), k * n_pad * 2),        # full weight
                _resident_spec((1, n_pad), n_pad * 4),            # bias row
            ],
            out_specs=pl.BlockSpec((tm, n_pad), lambda i: (i, 0)),
        ),
        compiler_params=pltpu.CompilerParams(
            dimension_semantics=("parallel",),                    # megacore on v7x
        ),
        cost_estimate=cost,
    )(x2, w_packed, b_packed)

    if return_padded:
        # hand the consumer the lane-dense padded logits (no slice pass);
        # valid columns are [:n], padded columns are exactly 0.
        return out
    out = out[:m, :n]
    return out.reshape(*lead, n)


class GatingNetworkApe:
    """y = x @ W.T + b.  Weight/bias are repacked ONCE at construction."""

    def __init__(self, weight, bias, *, tile_m=1024, out_dtype=jnp.float32):
        n, k = weight.shape
        self.n = int(n)
        self.k = int(k)
        self.n_pad = _round_up(max(self.n, LANE), LANE)   # lane-dense output
        # One-time repack: transpose, bf16 cast (halves weight DMA), zero-pad N.
        w_p = jnp.zeros((self.k, self.n_pad), jnp.bfloat16)
        self.w_packed = w_p.at[:, :self.n].set(weight.T.astype(jnp.bfloat16))
        b_p = jnp.zeros((1, self.n_pad), jnp.float32)
        self.b_packed = b_p.at[:, :self.n].set(bias.astype(jnp.float32))
        self.tile_m = int(tile_m)
        self.out_dtype = out_dtype
        # TODO(synk): for bit-exact parity with the f32 nn.Linear (sharp top-k
        # consumers), keep an f32 copy of the packed weight and skip the bf16 cast.

    def __call__(self, x, *, return_padded=False):
        return _gating_forward(x, self.w_packed, self.b_packed,
                               n=self.n, tile_m=self.tile_m,
                               out_dtype=self.out_dtype,
                               return_padded=return_padded)


# ------------------------------- driver ---------------------------------------

if __name__ == "__main__":
    B, T, INPUT_DIM, NUM_EXPERTS = 4, 8, 256, 8
    key = jax.random.PRNGKey(0)
    kx, kw, kb = jax.random.split(key, 3)

    x = jax.random.normal(kx, (B, T, INPUT_DIM), jnp.float32)
    bound = 1.0 / math.sqrt(INPUT_DIM)                    # torch Linear init range
    weight = jax.random.uniform(kw, (NUM_EXPERTS, INPUT_DIM), jnp.float32,
                                -bound, bound)
    bias = jax.random.uniform(kb, (NUM_EXPERTS,), jnp.float32, -bound, bound)

    gate = GatingNetworkApe(weight, bias)                 # one-time weight repack
    out = gate(x)
    jax.block_until_ready(out)

    assert out.shape == (B, T, NUM_EXPERTS), out.shape
    ref = x @ weight.T + bias                             # f32 reference
    err = float(jnp.max(jnp.abs(out - ref)))
    assert jnp.allclose(out, ref, atol=5e-2, rtol=5e-2), err  # bf16-matmul tolerance
    print("KERNEL_OK")
</pallas_src>

<mosaic_0001>
module attributes {stable_mosaic.version = 11 : i64} {
  func.func @_gating_kernel(%arg0: i32, %arg1: memref<16x256xf32, #tpu.memory_space<vmem>>, %arg2: memref<256x128xbf16, #tpu.memory_space<vmem>>, %arg3: memref<1x128xf32, #tpu.memory_space<vmem>>, %arg4: memref<16x128xf32, #tpu.memory_space<vmem>>) attributes {dimension_semantics = [#tpu.dimension_semantics<parallel>], iteration_bounds = array<i64: 2>, scalar_prefetch = 0 : i64, scratch_operands = 0 : i64, tpu.core_type = #tpu.core_type<tc>, window_params = [{transform_indices = @transform_0, window_bounds = array<i64: 16, 256>}, {pipeline_mode = #tpu.pipeline_mode<synchronous>, transform_indices = @transform_1, window_bounds = array<i64: 256, 128>}, {pipeline_mode = #tpu.pipeline_mode<synchronous>, transform_indices = @transform_2, window_bounds = array<i64: 1, 128>}, {transform_indices = @transform_3, window_bounds = array<i64: 16, 128>}]} {
    %c0 = arith.constant 0 : index
    %c0_0 = arith.constant 0 : index
    %0 = vector.load %arg1[%c0, %c0_0] : memref<16x256xf32, #tpu.memory_space<vmem>>, vector<16x256xf32>
    %1 = arith.truncf %0 : vector<16x256xf32> to vector<16x256xbf16>
    %c0_1 = arith.constant 0 : index
    %c0_2 = arith.constant 0 : index
    %2 = vector.load %arg2[%c0_1, %c0_2] : memref<256x128xbf16, #tpu.memory_space<vmem>>, vector<256x128xbf16>
    %cst = arith.constant dense<0.000000e+00> : vector<16x128xf32>
    %3 = tpu.matmul %1, %2, %cst {dimension_numbers = #tpu.dot_dimension_numbers<[1], [0], [0], [1], [0, 0, 1, 1], [], []>} : vector<16x256xbf16>, vector<256x128xbf16>, vector<16x128xf32> -> vector<16x128xf32>
    %c0_3 = arith.constant 0 : index
    %c0_4 = arith.constant 0 : index
    %4 = vector.load %arg3[%c0_3, %c0_4] : memref<1x128xf32, #tpu.memory_space<vmem>>, vector<1x128xf32>
    %5 = vector.broadcast %4 : vector<1x128xf32> to vector<16x128xf32>
    %6 = arith.addf %3, %5 : vector<16x128xf32>
    %c0_5 = arith.constant 0 : index
    %c0_6 = arith.constant 0 : index
    %7 = vector.load %arg4[%c0_5, %c0_6] : memref<16x128xf32, #tpu.memory_space<vmem>>, vector<16x128xf32>
    tpu.vector_store %arg4[%c0_5, %c0_6], %6 {strides = array<i32>} : memref<16x128xf32, #tpu.memory_space<vmem>>, vector<16x128xf32>,
    return
  }
  func.func @transform_0(%arg0: i32) -> (i32, i32) {
    %c0_i32 = arith.constant 0 : i32
    %c0_i32_0 = arith.constant 0 : i32
    return %arg0, %c0_i32 : i32, i32
  }
  func.func @transform_1(%arg0: i32) -> (i32, i32) {
    %c0_i32 = arith.constant 0 : i32
    %c0_i32_0 = arith.constant 0 : i32
    %c0_i32_1 = arith.constant 0 : i32
    return %c0_i32, %c0_i32_0 : i32, i32
  }
  func.func @transform_2(%arg0: i32) -> (i32, i32) {
    %c0_i32 = arith.constant 0 : i32
    %c0_i32_0 = arith.constant 0 : i32
    %c0_i32_1 = arith.constant 0 : i32
    return %c0_i32, %c0_i32_0 : i32, i32
  }
  func.func @transform_3(%arg0: i32) -> (i32, i32) {
    %c0_i32 = arith.constant 0 : i32
    %c0_i32_0 = arith.constant 0 : i32
    return %arg0, %c0_i32 : i32, i32
  }
}

</mosaic_0001>

<llo_original>
// kernel: _gating_forward.1
$region0: #{_gating_forward.1}
  #allocation0 [shape = 'u32[]', space=smem, size = 0x4, offset = 0x4, fixed_abs, tag = 'smem constant byte address 0x4 - core index']
  #allocation1 [shape = 'u32[144,128]{1,0:T(1,128)}', space=vmem, size = 0x12000, scoped, tag = 'internal scratch']
  %s0 = inlined_call_operand.hbm [shape: f32[32,256], index: 0, kind: input, shape index: {}]
  %s1 = inlined_call_operand.hbm [shape: bf16[256,128], index: 1, kind: input, shape index: {}]
  %s2 = inlined_call_operand.vmem [shape: f32[1,128], index: 2, kind: input, shape index: {}]
  %s3 = inlined_call_operand.vmem [shape: f32[32,128], index: 3, kind: output, shape index: {}]
  %s4 = sld [smem:[#allocation0]]
  $region53: #{_gating_forward.1} parent=0
    _
  %s6 = ssub.s32 1, %s4
  %s7 = scalar_select 0, %s6, %s4
  $region1: #{_gating_forward.1} parent=0
    #allocation2 [shape = 'u8[32768]{0}', space=vmem, size = 0x8000, scoped, tag = 'input window, operand 0']
    #allocation3 [shape = 's32[2]{0}', space=sflag, size = 0x8, scoped, tag = 'scoped memory for _gating_forward.1']
    #allocation4 [shape = 'u8[65536]{0}', space=vmem, size = 0x10000, scoped, tag = 'input window, operand 1, single buffered']
    #allocation5 [shape = 's32[1]{0}', space=sflag, size = 0x4, scoped, tag = 'scoped memory for _gating_forward.1']
    %8 = vsyncpa [#allocation3], 0
    %s9 = scalar_lea.sflag [#allocation3], 1
    %10 = vsyncpa %s9, 0
    %11 = vsyncpa [#allocation5], 0
    loop: start=0, step=1, limit=4
    $region2: #{_gating_forward.1} parent=1 // loop_pre_header
      _
    $region3: #{_gating_forward.1} parent=1 // loop_header
      %s13 = sphi 0, %s17
      %p14 = scmp.ge.s32.totalorder %s13, 4
      %s23 = sphi 0, %s25
      %s26 = sphi 0, %s23
      %s27 = sphi 0, %s26
      %s43 = sphi 0, %s27
      %s47 = sphi 0, %s47
      %s49 = sphi 0, %s47
      %s50 = sphi 0, %s49
      %s64 = sphi 0, %s50
      %s68 = sphi 0, %s68
      %s70 = sphi 0, %s68
      %s71 = sphi 0, %s70
      %s85 = sphi 0, %s71
      %s91 = sphi 0, %s93
      %s94 = sphi 0, %s91
      %s95 = sphi 0, %s94
      %s111 = sphi 0, %s95
    $region4: #{_gating_forward.1} parent=1 // loop_header_branch
      %16 = sbr.rel (%p14) target = $region8
    $region5: #{_gating_forward.1} parent=1 // loop_body
      %s18 = ssub.s32 %s13, 1
      %s19 = ssub.s32 %s13, 2
      %s20 = sadd.s32 %s13, 1
      %s21 = ssub.s32 %s13, %s20
      %p22 = scmp.eq.s32.totalorder %s21, 0
      %s24 = sadd.s32 %s23, 1
      %s25 = scalar_select %p22, %s23, %s24
      %p28 = pneg %p22
      %p29 = scmp.eq.s32.totalorder %s13, 1
      %p30 = por %p28, %p29
      %p31 = scmp.ne.s32.totalorder %s23, %s26
      %p32 = scmp.eq.s32.totalorder %s13, 0
      %p33 = por %p31, %p32
      %p34 = scmp.ne.s32.totalorder %s23, %s26
      %p35 = scmp.eq.s32.totalorder %s18, 1
      %p36 = por %p34, %p35
      %p37 = scmp.ne.s32.totalorder %s26, %s27
      %p38 = scmp.eq.s32.totalorder %s18, 0
      %p39 = por %p37, %p38
      %p40 = scmp.ne.s32.totalorder %s26, %s27
      %p41 = scmp.eq.s32.totalorder %s19, 1
      %p42 = por %p40, %p41
      %p44 = scmp.ne.s32.totalorder %s27, %s43
      %p45 = scmp.eq.s32.totalorder %s19, 0
      %p46 = por %p44, %p45
      %s48 = sadd.s32 %s47, 1
      %p51 = scmp.eq.s32.totalorder %s13, 1
      %p52 = scmp.ne.s32.totalorder %s47, %s49
      %p53 = scmp.eq.s32.totalorder %s13, 0
      %p54 = por %p52, %p53
      %p55 = scmp.ne.s32.totalorder %s47, %s49
      %p56 = scmp.eq.s32.totalorder %s18, 1
      %p57 = por %p55, %p56
      %p58 = scmp.ne.s32.totalorder %s49, %s50
      %p59 = scmp.eq.s32.totalorder %s18, 0
      %p60 = por %p58, %p59
      %p61 = scmp.ne.s32.totalorder %s49, %s50
      %p62 = scmp.eq.s32.totalorder %s19, 1
      %p63 = por %p61, %p62
      %p65 = scmp.ne.s32.totalorder %s50, %s64
      %p66 = scmp.eq.s32.totalorder %s19, 0
      %p67 = por %p65, %p66
      %s69 = sadd.s32 %s68, 1
      %p72 = scmp.eq.s32.totalorder %s13, 1
      %p73 = scmp.ne.s32.totalorder %s68, %s70
      %p74 = scmp.eq.s32.totalorder %s13, 0
      %p75 = por %p73, %p74
      %p76 = scmp.ne.s32.totalorder %s68, %s70
      %p77 = scmp.eq.s32.totalorder %s18, 1
      %p78 = por %p76, %p77
      %p79 = scmp.ne.s32.totalorder %s70, %s71
      %p80 = scmp.eq.s32.totalorder %s18, 0
      %p81 = por %p79, %p80
      %p82 = scmp.ne.s32.totalorder %s70, %s71
      %p83 = scmp.eq.s32.totalorder %s19, 1
      %p84 = por %p82, %p83
      %p86 = scmp.ne.s32.totalorder %s71, %s85
      %p87 = scmp.eq.s32.totalorder %s19, 0
      %p88 = por %p86, %p87
      %s89 = ssub.s32 %s13, %s20
      %p90 = scmp.eq.s32.totalorder %s89, 0
      %s92 = sadd.s32 %s91, 1
      %s93 = scalar_select %p90, %s91, %s92
      %p96 = pneg %p90
      %p97 = scmp.eq.s32.totalorder %s13, 1
      %p98 = por %p96, %p97
      %p99 = scmp.ne.s32.totalorder %s91, %s94
      %p100 = scmp.eq.s32.totalorder %s13, 0
      %p101 = por %p99, %p100
      %p102 = scmp.ne.s32.totalorder %s91, %s94
      %p103 = scmp.eq.s32.totalorder %s18, 1
      %p104 = por %p102, %p103
      %p105 = scmp.ne.s32.totalorder %s94, %s95
      %p106 = scmp.eq.s32.totalorder %s18, 0
      %p107 = por %p105, %p106
      %p108 = scmp.ne.s32.totalorder %s94, %s95
      %p109 = scmp.eq.s32.totalorder %s19, 1
      %p110 = por %p108, %p109
      %p112 = scmp.ne.s32.totalorder %s95, %s111
      %p113 = scmp.eq.s32.totalorder %s19, 0
      %p114 = por %p112, %p113
      %p115 = scmp.le.s32.totalorder 1, %s13
      %p116 = scmp.lt.s32.totalorder %s13, 3
      %p117 = pnand %p115, %p116
      %p118 = pneg %p117
      // Predicated region
      $region9: #{_gating_forward.1} parent=5 // pred_check
        _
      $region10: #{_gating_forward.1} parent=5 // pred_check_branch
        %120 = sbr.rel (%p117) target = $region12
      $region11: #{_gating_forward.1} parent=5 // pred_region
        %s121 = ssub.s32 %s13, 1
        // Predicated region
        $region13: #{_gating_forward.1} parent=11 // pred_check
          %p122 = pneg %p60
        $region14: #{_gating_forward.1} parent=11 // pred_check_branch
          %124 = sbr.rel (%p122) target = $region16
        $region15: #{_gating_forward.1} parent=11 // pred_region
          %s126 = ssub.s32 2048, 2048
          %127 = vsyncadd [#allocation5], %s126
          %s128 = sshll.u32 [#allocation4], 4
          %s129 = int_to_ptr.vmem [resolvable:$true] %s128
          %134 = dma.hbm_to_vmem [thread:$0]  %s1, 2048, %s129, [#allocation5], 64, 64, 4
        $region16: #{_gating_forward.1} parent=11 // pred_fallthru
          _
        // Predicated region
        $region17: #{_gating_forward.1} parent=11 // pred_check
          %p135 = pneg %p81
        $region18: #{_gating_forward.1} parent=11 // pred_check_branch
          %137 = sbr.rel (%p135) target = $region20
        $region19: #{_gating_forward.1} parent=11 // pred_region
          _
        $region20: #{_gating_forward.1} parent=11 // pred_fallthru
          _
      $region12: #{_gating_forward.1} parent=5 // pred_fallthru
        _
      %p138 = scmp.lt.s32.totalorder %s13, 2
      // Predicated region
      $region21: #{_gating_forward.1} parent=5 // pred_check
        %p139 = pneg %p138
      $region22: #{_gating_forward.1} parent=5 // pred_check_branch
        %141 = sbr.rel (%p139) target = $region24
      $region23: #{_gating_forward.1} parent=5 // pred_region
        // Predicated region
        $region25: #{_gating_forward.1} parent=23 // pred_check
          %p142 = pneg %p33
        $region26: #{_gating_forward.1} parent=23 // pred_check_branch
          %144 = sbr.rel (%p142) target = $region28
        $region27: #{_gating_forward.1} parent=23 // pred_region
          %s145 = sand.u32 %s23, 1
          %s146 = scalar_lea.sflag [#allocation3], %s145
          %s147 = sand.u32 %s23, 1
          %s148 = smul.addr %s147, 32
          %s149 = scalar_lea.vmem [#allocation2], %s148
          %s150 = smul.u32 2, %s13
          %s152 = ssub.s32 512, 512
          %153 = vsyncadd %s146, %s152
          %s154 = smul.addr %s150, 2
          %s155 = smul.addr %s154, 128
          %s156 = scalar_lea.hbm %s0, %s155
          %s157 = sshll.u32 %s149, 4
          %s158 = int_to_ptr.vmem [resolvable:$true] %s157
          %163 = dma.hbm_to_vmem [thread:$0]  %s156, 512, %s158, %s146, 256, 256, 16
        $region28: #{_gating_forward.1} parent=23 // pred_fallthru
          _
      $region24: #{_gating_forward.1} parent=5 // pred_fallthru
        _
      %p164 = scmp.le.s32.totalorder 1, %s13
      %p165 = scmp.lt.s32.totalorder %s13, 3
      %p166 = pnand %p164, %p165
      %p167 = pneg %p166
      // Predicated region
      $region29: #{_gating_forward.1} parent=5 // pred_check
        _
      $region30: #{_gating_forward.1} parent=5 // pred_check_branch
        %169 = sbr.rel (%p166) target = $region32
      $region31: #{_gating_forward.1} parent=5 // pred_region
        %s170 = ssub.s32 %s13, 1
        %s171 = sand.u32 %s26, 1
        %s172 = scalar_lea.sflag [#allocation3], %s171
        %s173 = sand.u32 %s26, 1
        %s174 = smul.addr %s173, 32
        %s175 = scalar_lea.vmem [#allocation2], %s174
        // Predicated region
        $region33: #{_gating_forward.1} parent=31 // pred_check
          %p176 = pneg %p39
        $region34: #{_gating_forward.1} parent=31 // pred_check_branch
          %178 = sbr.rel (%p176) target = $region36
        $region35: #{_gating_forward.1} parent=31 // pred_region
          %179 = dma.done %s172, 512
        $region36: #{_gating_forward.1} parent=31 // pred_fallthru
          _
        // Predicated region
        $region37: #{_gating_forward.1} parent=31 // pred_check
          %p180 = pneg %p60
        $region38: #{_gating_forward.1} parent=31 // pred_check_branch
          %182 = sbr.rel (%p180) target = $region40
        $region39: #{_gating_forward.1} parent=31 // pred_region
          %183 = dma.done [#allocation5], 2048
        $region40: #{_gating_forward.1} parent=31 // pred_fallthru
          _
        %s184 = sand.u32 %s26, 1
        %s185 = scalar_lea.sflag [#allocation3], %s184
        %s186 = sand.u32 %s26, 1
        %s187 = smul.addr %s186, 32
        %s188 = scalar_lea.vmem [#allocation2], %s187
        %p189 = pneg %p39
        %p190 = pneg %p36
        %p191 = pneg %p60
        %p192 = pneg %p57
        %p193 = pneg %p81
        %p194 = pneg %p78
        %p195 = pneg %p107
        %p196 = pneg %p104
        %s197 = smul.u32 2, %s18
        %p198 = scmp.lt.s32.totalorder %s197, 3
        %s199 = scalar_select %p198, %s197, 3
        %s200 = smul.addr %s199, 8
        %s201 = scalar_lea.vmem %s3, %s200
        %s202 = smul.u32 2, %s18
        %s203 = smul.u32 2, %s18
        %p204 = scmp.lt.s32.totalorder %s203, 3
        %s205 = scalar_select %p204, %s203, 3
        %s206 = smul.addr %s205, 8
        %s207 = scalar_lea.vmem %s3, %s206
        %s208 = smul.u32 2, %s18
        %v210 = vld [vmem:[%s175] sm:$0xff]
        %v211 = vld [vmem:[%s175 + $0x8] sm:$0xff]
        %v212 = vld [vmem:[%s175 + $0x10] sm:$0xff]
        %v213 = vld [vmem:[%s175 + $0x18] sm:$0xff]
        %v214 = vpack.c.bf16 %v212, %v210
        %v215 = vpack.c.bf16 %v213, %v211
        %v216 = vld [vmem:[#allocation4] sm:$0xf]
        %v217 = vld [vmem:[#allocation4 + $0x4] sm:$0xf]
        %v218 = vld [vmem:[#allocation4 + $0x8] sm:$0xf]
        %v219 = vld [vmem:[#allocation4 + $0xc] sm:$0xf]
        %v220 = vld [vmem:[#allocation4 + $0x10] sm:$0xf]
        %v221 = vld [vmem:[#allocation4 + $0x14] sm:$0xf]
        %v222 = vld [vmem:[#allocation4 + $0x18] sm:$0xf]
        %v223 = vld [vmem:[#allocation4 + $0x1c] sm:$0xf]
        %v224 = vld [vmem:[#allocation4 + $0x20] sm:$0xf]
        %v225 = vld [vmem:[#allocation4 + $0x24] sm:$0xf]
        %v226 = vld [vmem:[#allocation4 + $0x28] sm:$0xf]
        %v227 = vld [vmem:[#allocation4 + $0x2c] sm:$0xf]
        %v228 = vld [vmem:[#allocation4 + $0x30] sm:$0xf]
        %v229 = vld [vmem:[#allocation4 + $0x34] sm:$0xf]
        %v230 = vld [vmem:[#allocation4 + $0x38] sm:$0xf]
        %v231 = vld [vmem:[#allocation4 + $0x3c] sm:$0xf]
        %v232 = vld [vmem:[#allocation4 + $0x40] sm:$0xf]
        %v233 = vld [vmem:[#allocation4 + $0x44] sm:$0xf]
        %v234 = vld [vmem:[#allocation4 + $0x48] sm:$0xf]
        %v235 = vld [vmem:[#allocation4 + $0x4c] sm:$0xf]
        %v236 = vld [vmem:[#allocation4 + $0x50] sm:$0xf]
        %v237 = vld [vmem:[#allocation4 + $0x54] sm:$0xf]
        %v238 = vld [vmem:[#allocation4 + $0x58] sm:$0xf]
        %v239 = vld [vmem:[#allocation4 + $0x5c] sm:$0xf]
        %v240 = vld [vmem:[#allocation4 + $0x60] sm:$0xf]
        %v241 = vld [vmem:[#allocation4 + $0x64] sm:$0xf]
        %v242 = vld [vmem:[#allocation4 + $0x68] sm:$0xf]
        %v243 = vld [vmem:[#allocation4 + $0x6c] sm:$0xf]
        %v244 = vld [vmem:[#allocation4 + $0x70] sm:$0xf]
        %v245 = vld [vmem:[#allocation4 + $0x74] sm:$0xf]
        %v246 = vld [vmem:[#allocation4 + $0x78] sm:$0xf]
        %v247 = vld [vmem:[#allocation4 + $0x7c] sm:$0xf]
        %v248 = vld [vmem:[%s2] sm:$0x1]
        %v250 = vlaneseq
        %v251 = vshrl.u32 %v250, 7
        %v252 = vsub.s32 0, %v251
        %v253 = vrot.slane %v248, %v252
        %v287 = vunpack.c.l.b16 %v216
        %v288 = vunpack.c.l.b16 %v217
        %v289 = vunpack.c.l.b16 %v218
        %v290 = vunpack.c.l.b16 %v219
        %v291 = vunpack.c.l.b16 %v220
        %v292 = vunpack.c.l.b16 %v221
        %v293 = vunpack.c.l.b16 %v222
        %v294 = vunpack.c.l.b16 %v223
        %v295 = vunpack.c.l.b16 %v224
        %v296 = vunpack.c.l.b16 %v225
        %v297 = vunpack.c.l.b16 %v226
        %v298 = vunpack.c.l.b16 %v227
        %v299 = vunpack.c.l.b16 %v228
        %v300 = vunpack.c.l.b16 %v229
        %v301 = vunpack.c.l.b16 %v230
        %v302 = vunpack.c.l.b16 %v231
        %v303 = vunpack.c.l.b16 %v232
        %v304 = vunpack.c.l.b16 %v233
        %v305 = vunpack.c.l.b16 %v234
        %v306 = vunpack.c.l.b16 %v235
        %v307 = vunpack.c.l.b16 %v236
        %v308 = vunpack.c.l.b16 %v237
        %v309 = vunpack.c.l.b16 %v238
        %v310 = vunpack.c.l.b16 %v239
        %v311 = vunpack.c.l.b16 %v240
        %v312 = vunpack.c.l.b16 %v241
        %v313 = vunpack.c.l.b16 %v242
        %v314 = vunpack.c.l.b16 %v243
        %v315 = vunpack.c.l.b16 %v244
        %v316 = vunpack.c.l.b16 %v245
        %v317 = vunpack.c.l.b16 %v246
        %v318 = vunpack.c.l.b16 %v247
        %v319 = vpack.c.b16 %v288, %v287
        %v320 = vpack.c.b16 %v290, %v289
        %v321 = vpack.c.b16 %v292, %v291
        %v322 = vpack.c.b16 %v294, %v293
        %v323 = vpack.c.b16 %v296, %v295
        %v324 = vpack.c.b16 %v298, %v297
        %v325 = vpack.c.b16 %v300, %v299
        %v326 = vpack.c.b16 %v302, %v301
        %v327 = vpack.c.b16 %v304, %v303
        %v328 = vpack.c.b16 %v306, %v305
        %v329 = vpack.c.b16 %v308, %v307
        %v330 = vpack.c.b16 %v310, %v309
        %v331 = vpack.c.b16 %v312, %v311
        %v332 = vpack.c.b16 %v314, %v313
        %v333 = vpack.c.b16 %v316, %v315
        %v334 = vpack.c.b16 %v318, %v317
        %351 = vmatprep.subr.bf16.mxu0 0
        %352 = vmatpush1.bf16.msra.mxu0 %v319
        %353 = vmatprep.subr.bf16.mxu0 0
        %354 = vmatpush1.bf16.msra.mxu0 %v320
        %355 = vmatprep.subr.bf16.mxu0 0
        %356 = vmatpush1.bf16.msra.mxu0 %v321
        %357 = vmatprep.subr.bf16.mxu0 0
        %358 = vmatpush1.bf16.msra.mxu0 %v322
        %359 = vmatprep.subr.bf16.mxu0 0
        %360 = vmatpush1.bf16.msra.mxu0 %v323
        %361 = vmatprep.subr.bf16.mxu0 0
        %362 = vmatpush1.bf16.msra.mxu0 %v324
        %363 = vmatprep.subr.bf16.mxu0 0
        %364 = vmatpush1.bf16.msra.mxu0 %v325
        %365 = vmatprep.subr.bf16.mxu0 0
        %366 = vmatpush1.bf16.msra.mxu0 %v326
        %367 = vmatprep.subr.bf16.mxu0 0
        %368 = vmatpush1.bf16.msra.mxu0 %v327
        %369 = vmatprep.subr.bf16.mxu0 0
        %370 = vmatpush1.bf16.msra.mxu0 %v328
        %371 = vmatprep.subr.bf16.mxu0 0
        %372 = vmatpush1.bf16.msra.mxu0 %v329
        %373 = vmatprep.subr.bf16.mxu0 0
        %374 = vmatpush1.bf16.msra.mxu0 %v330
        %375 = vmatprep.subr.bf16.mxu0 0
        %376 = vmatpush1.bf16.msra.mxu0 %v331
        %377 = vmatprep.subr.bf16.mxu0 0
        %378 = vmatpush1.bf16.msra.mxu0 %v332
        %379 = vmatprep.subr.bf16.mxu0 0
        %380 = vmatpush1.bf16.msra.mxu0 %v333
        %381 = vmatprep.subr.bf16.mxu0 0
        %382 = vmatpush1.bf16.msra.mxu0 %v334
        %383 = vmatprep.mubr.bf16.mxu0 %v215
        %384 = vmatmul.mubr.bf16.gmra.mrb[0].mxu0 %v214
        %v385 = vpop.f32.mrb[0].mxu0
        %v386 = vadd.f32 %v253, %v385
        %v387 = vpop.f32.mrb[0].mxu0
        %v388 = vpop.f32.mrb[0].mxu0
        %v389 = vadd.f32 %v253, %v388
        %v390 = vpop.f32.mrb[0].mxu0
        %391 = vdwg.mxu0
        %392 = vst [vmem:[%s207] sm:$0xff] %v386
        %393 = vst [vmem:[%s207 + $0x8] sm:$0xff] %v389
        %s394 = smul.u32 2, %s18
        %p395 = scmp.lt.s32.totalorder %s394, 3
        %s396 = scalar_select %p395, %s394, 3
        %s397 = smul.addr %s396, 8
        %s398 = scalar_lea.vmem %s3, %s397
        // Predicated region
        $region41: #{_gating_forward.1} parent=31 // pred_check
          %p399 = pneg %p104
        $region42: #{_gating_forward.1} parent=31 // pred_check_branch
          %401 = sbr.rel (%p399) target = $region44
        $region43: #{_gating_forward.1} parent=31 // pred_region
          %s402 = smul.u32 2, %s18
        $region44: #{_gating_forward.1} parent=31 // pred_fallthru
          _
      $region32: #{_gating_forward.1} parent=5 // pred_fallthru
        _
      %p403 = scmp.le.s32.totalorder 2, %s13
      // Predicated region
      $region45: #{_gating_forward.1} parent=5 // pred_check
        %p404 = pneg %p403
      $region46: #{_gating_forward.1} parent=5 // pred_check_branch
        %406 = sbr.rel (%p404) target = $region48
      $region47: #{_gating_forward.1} parent=5 // pred_region
        %s407 = ssub.s32 %s13, 2
        // Predicated region
        $region49: #{_gating_forward.1} parent=47 // pred_check
          %p408 = pneg %p110
        $region50: #{_gating_forward.1} parent=47 // pred_check_branch
          %410 = sbr.rel (%p408) target = $region52
        $region51: #{_gating_forward.1} parent=47 // pred_region
          %s411 = smul.u32 2, %s19
          %p412 = scmp.lt.s32.totalorder %s411, 3
          %s413 = scalar_select %p412, %s411, 3
          %s414 = smul.addr %s413, 8
          %s415 = scalar_lea.vmem %s3, %s414
        $region52: #{_gating_forward.1} parent=47 // pred_fallthru
          _
      $region48: #{_gating_forward.1} parent=5 // pred_fallthru
        _
    $region6: #{_gating_forward.1} parent=1 // loop_footer
      %s17 = sadd.s32 1, %s13
    $region7: #{_gating_forward.1} parent=1 // loop_footer_branch
      %12 = sbr.rel target = $region3
    $region8: #{_gating_forward.1} parent=1 // loop_exit
      _
    %416 = vsyncpa [#allocation3], 1
    %s417 = scalar_lea.sflag [#allocation3], 1
    %418 = vsyncpa %s417, 1
    %419 = vsyncpa [#allocation5], 1

</llo_original>
